<compile_context>
chip_gen: v7x
topology: tpu7x:2x2x1
jax: 0.10.0
libtpu: 0.0.40
codegen_flags: <defaults>
</compile_context>

<pallas_src>
import jax
import jax.numpy as jnp
from jax.experimental import pallas as pl
from jax.experimental.pallas import tpu as pltpu


def _round_up(n, m):
    return ((n + m - 1) // m) * m


def ss_region_pred_kernel(x_ref, rs_ref, w1_ref, b1_ref, w3_ref, b3_ref,
                          w2q_ref, out_ref):
    """Fused: Linear(+BN folded) -> ReLU -> Linear -> fc_layer2(query half,
    mean-folded) -> + region score -> sigmoid, for one batch tile."""
    x = x_ref[...].astype(jnp.float32)                        # [TB, d_m1]

    # Linear(d_m1, d_m2) with BatchNorm (batch stats) pre-folded into w1/b1.
    h = jnp.dot(x, w1_ref[...], preferred_element_type=jnp.float32) + b1_ref[...]
    h = jnp.maximum(h, 0.0)                                   # ReLU
    # TODO(synk): nn.Dropout(p=0.1) is stochastic in train mode; identity here.

    # Linear(d_m2, d_m3)
    q = jnp.dot(h, w3_ref[...], preferred_element_type=jnp.float32) + b3_ref[...]

    # fc_layer2 query half with the mean over d_node folded into a vector.
    s = jnp.sum(q * w2q_ref[...], axis=-1, keepdims=True)     # [TB, 1]

    # Add per-(b, region) precomputed region scores, sigmoid, lane-dense store.
    out_ref[...] = jax.nn.sigmoid(s + rs_ref[...])            # [TB, R_PAD]


def ss_region_pred_forward(params, o, d, o_reg, d_reg, regions, weights=None,
                           train_phase=True, tile_b=512):
    """JAX/Pallas equivalent of SSRegionPred.forward."""
    del weights  # unused in the PyTorch forward as well

    node_emb = params["node_emb"]
    region_emb = params["region_emb"].astype(jnp.float32)

    # --- ODEncoder + region embedding lookups + concat (glue, plain JAX) ---
    o_emb = jnp.take(node_emb, o, axis=0)
    d_emb = jnp.take(node_emb, d, axis=0)
    o_reg_emb = jnp.take(region_emb, o_reg, axis=0)
    d_reg_emb = jnp.take(region_emb, d_reg, axis=0)
    query_in = jnp.concatenate([o_emb, o_reg_emb, d_emb, d_reg_emb],
                               axis=1).astype(jnp.float32)          # [B, d_m1]

    w1 = params["w1"].astype(jnp.float32)
    b1 = params["b1"].reshape(1, -1).astype(jnp.float32)
    gamma = params["gamma"].reshape(1, -1).astype(jnp.float32)
    beta = params["beta"].reshape(1, -1).astype(jnp.float32)
    w3 = params["w3"].astype(jnp.float32)
    b3 = params["b3"].reshape(1, -1).astype(jnp.float32)
    w2q = params["w2q"].astype(jnp.float32)
    w2r = params["w2r"].astype(jnp.float32)

    # --- BatchNorm1d(d_m2, eps=1e-6) training-mode batch statistics, hoisted
    #     out of the kernel (full-batch stats stay correct under batch tiling)
    #     and folded into the first Linear as an affine. ---
    # TODO(synk): running-stats update / eval-mode running statistics are not
    # modelled; batch statistics are always used (matches train() forward).
    h_pre = query_in @ w1 + b1
    mu = jnp.mean(h_pre, axis=0, keepdims=True)
    var = jnp.mean((h_pre - mu) ** 2, axis=0, keepdims=True)        # biased
    bn_scale = gamma * jax.lax.rsqrt(var + 1e-6)                    # [1, d_m2]
    w1_eff = w1 * bn_scale                                          # [d_m1, d_m2]
    b1_eff = (b1 - mu) * bn_scale + beta                            # [1, d_m2]

    # --- fold mean over d_node into fc_layer2's (bias-free) weights ---
    w2q_vec = jnp.mean(w2q, axis=1).reshape(1, -1)                  # [1, d_m3]
    w2r_vec = jnp.mean(w2r, axis=1)                                 # [d_region]
    region_scores = region_emb @ w2r_vec                            # [region_num]
    rs = jnp.take(region_scores, regions, axis=0)                   # [B, R]

    B, d_m1 = query_in.shape
    R = regions.shape[1]
    d_m2 = w1.shape[1]
    d_m3 = w3.shape[1]

    R_PAD = _round_up(max(R, 128), 128)        # lane-dense input/output
    TILE_B = min(tile_b, _round_up(B, 8))      # batch tile (VMEM-friendly)
    B_PAD = _round_up(B, TILE_B)

    x = query_in.astype(jnp.bfloat16)          # halve HBM input bytes
    if B_PAD != B:
        x = jnp.pad(x, ((0, B_PAD - B), (0, 0)))
        rs = jnp.pad(rs, ((0, B_PAD - B), (0, 0)))
    rs = jnp.pad(rs, ((0, 0), (0, R_PAD - R)))

    grid = (B_PAD // TILE_B,)

    def batch_spec(shape):
        return pl.BlockSpec(shape, lambda i: (i, 0))

    def full_spec(shape):
        return pl.BlockSpec(shape, lambda i: (0, 0))

    out = pl.pallas_call(
        ss_region_pred_kernel,
        out_shape=jax.ShapeDtypeStruct((B_PAD, R_PAD), jnp.float32),
        grid=grid,
        in_specs=[
            batch_spec((TILE_B, d_m1)),        # query_in tile (bf16)
            batch_spec((TILE_B, R_PAD)),       # per-(b, region) scores
            full_spec((d_m1, d_m2)),           # w1_eff (BN folded)
            full_spec((1, d_m2)),              # b1_eff
            full_spec((d_m2, d_m3)),           # w3
            full_spec((1, d_m3)),              # b3
            full_spec((1, d_m3)),              # mean(W2q) over d_node
        ],
        out_specs=batch_spec((TILE_B, R_PAD)),
        compiler_params=pltpu.CompilerParams(
            dimension_semantics=("parallel",),
            vmem_limit_bytes=32 * 1024 * 1024),
    )(x, rs, w1_eff, b1_eff, w3, b3, w2q_vec)

    out = out[:B, :R]

    if train_phase:
        return out

    # Eval branch (argmax + one-hot gather of region ids) -- plain JAX glue.
    g_ssgrid = jnp.argmax(out, axis=1)
    onehot = jax.nn.one_hot(g_ssgrid, out.shape[1], dtype=regions.dtype)
    return jnp.sum(onehot * regions, axis=1)


if __name__ == "__main__":
    key = jax.random.PRNGKey(0)

    # Small synthetic hparams consistent with the module:
    B = 8                 # batch_size
    node_num = 32
    d_node = 16
    region_num = 8
    d_region = 16
    d_m1 = 2 * (d_node + d_region)   # 64 : cat(o_emb, o_reg, d_emb, d_reg)
    d_m2 = 32
    d_m3 = 16
    d_m4 = d_m3 + d_region           # 32 : cat(query, region_emb)

    ks = jax.random.split(key, 14)
    params = {
        "node_emb":   0.1 * jax.random.normal(ks[0], (node_num, d_node), jnp.float32),
        "region_emb": 0.1 * jax.random.normal(ks[1], (region_num, d_region), jnp.float32),
        # MLP Linear(d_m1, d_m2)
        "w1": 0.1 * jax.random.normal(ks[2], (d_m1, d_m2), jnp.float32),
        "b1": 0.1 * jax.random.normal(ks[3], (1, d_m2), jnp.float32),
        # BatchNorm1d(d_m2)
        "gamma": jnp.ones((1, d_m2), jnp.float32),
        "beta":  jnp.zeros((1, d_m2), jnp.float32),
        # MLP Linear(d_m2, d_m3)
        "w3": 0.1 * jax.random.normal(ks[4], (d_m2, d_m3), jnp.float32),
        "b3": 0.1 * jax.random.normal(ks[5], (1, d_m3), jnp.float32),
        # fc_layer2: Linear(d_m4, d_node, bias=False), split by input halves
        "w2q": 0.1 * jax.random.normal(ks[6], (d_m3, d_node), jnp.float32),
        "w2r": 0.1 * jax.random.normal(ks[7], (d_region, d_node), jnp.float32),
        # fc_layer1 / dense exist in __init__ but are unused in forward.
    }

    o = jax.random.randint(ks[8], (B,), 0, node_num)
    d = jax.random.randint(ks[9], (B,), 0, node_num)
    o_reg = jax.random.randint(ks[10], (B,), 0, region_num)
    d_reg = jax.random.randint(ks[11], (B,), 0, region_num)
    regions = jnp.tile(jnp.arange(region_num, dtype=jnp.int32)[None, :], (B, 1))
    weights = jnp.ones((B,), jnp.float32)   # unused in forward

    out = ss_region_pred_forward(params, o, d, o_reg, d_reg, regions, weights,
                                 train_phase=True)
    out = jax.block_until_ready(out)
    assert out.shape == (B, region_num), out.shape
    assert bool(jnp.all(jnp.isfinite(out)))
    assert bool(jnp.all((out > 0.0) & (out < 1.0)))
    print("KERNEL_OK")
</pallas_src>

<mosaic_0001>
module attributes {stable_mosaic.version = 11 : i64} {
  func.func @ss_region_pred_kernel(%arg0: i32, %arg1: memref<8x64xbf16, #tpu.memory_space<vmem>>, %arg2: memref<8x128xf32, #tpu.memory_space<vmem>>, %arg3: memref<64x32xf32, #tpu.memory_space<vmem>>, %arg4: memref<1x32xf32, #tpu.memory_space<vmem>>, %arg5: memref<32x16xf32, #tpu.memory_space<vmem>>, %arg6: memref<1x16xf32, #tpu.memory_space<vmem>>, %arg7: memref<1x16xf32, #tpu.memory_space<vmem>>, %arg8: memref<8x128xf32, #tpu.memory_space<vmem>>) attributes {dimension_semantics = [#tpu.dimension_semantics<parallel>], iteration_bounds = array<i64: 1>, scalar_prefetch = 0 : i64, scratch_operands = 0 : i64, tpu.core_type = #tpu.core_type<tc>, window_params = [{transform_indices = @transform_0, window_bounds = array<i64: 8, 64>}, {transform_indices = @transform_1, window_bounds = array<i64: 8, 128>}, {pipeline_mode = #tpu.pipeline_mode<synchronous>, transform_indices = @transform_2, window_bounds = array<i64: 64, 32>}, {pipeline_mode = #tpu.pipeline_mode<synchronous>, transform_indices = @transform_3, window_bounds = array<i64: 1, 32>}, {pipeline_mode = #tpu.pipeline_mode<synchronous>, transform_indices = @transform_4, window_bounds = array<i64: 32, 16>}, {pipeline_mode = #tpu.pipeline_mode<synchronous>, transform_indices = @transform_5, window_bounds = array<i64: 1, 16>}, {pipeline_mode = #tpu.pipeline_mode<synchronous>, transform_indices = @transform_6, window_bounds = array<i64: 1, 16>}, {transform_indices = @transform_7, window_bounds = array<i64: 8, 128>}]} {
    %c0 = arith.constant 0 : index
    %c0_0 = arith.constant 0 : index
    %0 = vector.load %arg1[%c0, %c0_0] : memref<8x64xbf16, #tpu.memory_space<vmem>>, vector<8x64xbf16>
    %1 = arith.extf %0 : vector<8x64xbf16> to vector<8x64xf32>
    %c0_1 = arith.constant 0 : index
    %c0_2 = arith.constant 0 : index
    %2 = vector.load %arg3[%c0_1, %c0_2] : memref<64x32xf32, #tpu.memory_space<vmem>>, vector<64x32xf32>
    %cst = arith.constant dense<0.000000e+00> : vector<8x32xf32>
    %3 = tpu.matmul %1, %2, %cst {dimension_numbers = #tpu.dot_dimension_numbers<[1], [0], [0], [1], [0, 0, 1, 1], [], []>} : vector<8x64xf32>, vector<64x32xf32>, vector<8x32xf32> -> vector<8x32xf32>
    %c0_3 = arith.constant 0 : index
    %c0_4 = arith.constant 0 : index
    %4 = vector.load %arg4[%c0_3, %c0_4] : memref<1x32xf32, #tpu.memory_space<vmem>>, vector<1x32xf32>
    %5 = vector.broadcast %4 : vector<1x32xf32> to vector<8x32xf32>
    %6 = arith.addf %3, %5 : vector<8x32xf32>
    %cst_5 = arith.constant 0.000000e+00 : f32
    %7 = vector.broadcast %cst_5 : f32 to vector<8x32xf32>
    %8 = arith.maximumf %6, %7 : vector<8x32xf32>
    %c0_6 = arith.constant 0 : index
    %c0_7 = arith.constant 0 : index
    %9 = vector.load %arg5[%c0_6, %c0_7] : memref<32x16xf32, #tpu.memory_space<vmem>>, vector<32x16xf32>
    %cst_8 = arith.constant dense<0.000000e+00> : vector<8x16xf32>
    %10 = tpu.matmul %8, %9, %cst_8 {dimension_numbers = #tpu.dot_dimension_numbers<[1], [0], [0], [1], [0, 0, 1, 1], [], []>} : vector<8x32xf32>, vector<32x16xf32>, vector<8x16xf32> -> vector<8x16xf32>
    %c0_9 = arith.constant 0 : index
    %c0_10 = arith.constant 0 : index
    %11 = vector.load %arg6[%c0_9, %c0_10] : memref<1x16xf32, #tpu.memory_space<vmem>>, vector<1x16xf32>
    %12 = vector.broadcast %11 : vector<1x16xf32> to vector<8x16xf32>
    %13 = arith.addf %10, %12 : vector<8x16xf32>
    %c0_11 = arith.constant 0 : index
    %c0_12 = arith.constant 0 : index
    %14 = vector.load %arg7[%c0_11, %c0_12] : memref<1x16xf32, #tpu.memory_space<vmem>>, vector<1x16xf32>
    %15 = vector.broadcast %14 : vector<1x16xf32> to vector<8x16xf32>
    %16 = arith.mulf %13, %15 : vector<8x16xf32>
    %cst_13 = arith.constant dense<0.000000e+00> : vector<8xf32>
    %17 = vector.multi_reduction <add>, %16, %cst_13 [1] : vector<8x16xf32> to vector<8xf32>
    %18 = vector.shape_cast %17 : vector<8xf32> to vector<8x1xf32>
    %c0_14 = arith.constant 0 : index
    %c0_15 = arith.constant 0 : index
    %19 = vector.load %arg2[%c0_14, %c0_15] : memref<8x128xf32, #tpu.memory_space<vmem>>, vector<8x128xf32>
    %20 = vector.broadcast %18 : vector<8x1xf32> to vector<8x128xf32>
    %21 = arith.addf %20, %19 : vector<8x128xf32>
    %22 = arith.negf %21 : vector<8x128xf32>
    %23 = math.exp %22 : vector<8x128xf32>
    %cst_16 = arith.constant 1.000000e+00 : f32
    %24 = vector.broadcast %cst_16 : f32 to vector<8x128xf32>
    %25 = arith.addf %24, %23 : vector<8x128xf32>
    %26 = arith.divf %24, %25 : vector<8x128xf32>
    %c0_17 = arith.constant 0 : index
    %c0_18 = arith.constant 0 : index
    %27 = vector.load %arg8[%c0_17, %c0_18] : memref<8x128xf32, #tpu.memory_space<vmem>>, vector<8x128xf32>
    tpu.vector_store %arg8[%c0_17, %c0_18], %26 {strides = array<i32>} : memref<8x128xf32, #tpu.memory_space<vmem>>, vector<8x128xf32>,
    return
  }
  func.func @transform_0(%arg0: i32) -> (i32, i32) {
    %c0_i32 = arith.constant 0 : i32
    %c0_i32_0 = arith.constant 0 : i32
    return %arg0, %c0_i32 : i32, i32
  }
  func.func @transform_1(%arg0: i32) -> (i32, i32) {
    %c0_i32 = arith.constant 0 : i32
    %c0_i32_0 = arith.constant 0 : i32
    return %arg0, %c0_i32 : i32, i32
  }
  func.func @transform_2(%arg0: i32) -> (i32, i32) {
    %c0_i32 = arith.constant 0 : i32
    %c0_i32_0 = arith.constant 0 : i32
    %c0_i32_1 = arith.constant 0 : i32
    return %c0_i32, %c0_i32_0 : i32, i32
  }
  func.func @transform_3(%arg0: i32) -> (i32, i32) {
    %c0_i32 = arith.constant 0 : i32
    %c0_i32_0 = arith.constant 0 : i32
    %c0_i32_1 = arith.constant 0 : i32
    return %c0_i32, %c0_i32_0 : i32, i32
  }
  func.func @transform_4(%arg0: i32) -> (i32, i32) {
    %c0_i32 = arith.constant 0 : i32
    %c0_i32_0 = arith.constant 0 : i32
    %c0_i32_1 = arith.constant 0 : i32
    return %c0_i32, %c0_i32_0 : i32, i32
  }
  func.func @transform_5(%arg0: i32) -> (i32, i32) {
    %c0_i32 = arith.constant 0 : i32
    %c0_i32_0 = arith.constant 0 : i32
    %c0_i32_1 = arith.constant 0 : i32
    return %c0_i32, %c0_i32_0 : i32, i32
  }
  func.func @transform_6(%arg0: i32) -> (i32, i32) {
    %c0_i32 = arith.constant 0 : i32
    %c0_i32_0 = arith.constant 0 : i32
    %c0_i32_1 = arith.constant 0 : i32
    return %c0_i32, %c0_i32_0 : i32, i32
  }
  func.func @transform_7(%arg0: i32) -> (i32, i32) {
    %c0_i32 = arith.constant 0 : i32
    %c0_i32_0 = arith.constant 0 : i32
    return %arg0, %c0_i32 : i32, i32
  }
}

</mosaic_0001>

<llo_original>
// kernel: tpu_custom_call.1
$region0: #{tpu_custom_call.1}
  #allocation0 [shape = 'u32[]', space=smem, size = 0x4, offset = 0x4, fixed_abs, tag = 'smem constant byte address 0x4 - core index']
  #allocation1 [shape = 'u32[144,128]{1,0:T(1,128)}', space=vmem, size = 0x12000, scoped, tag = 'internal scratch']
  %s0 = inlined_call_operand.vmem [shape: bf16[8,64], index: 0, kind: input, shape index: {}]
  %s1 = inlined_call_operand.vmem [shape: f32[8,128], index: 1, kind: input, shape index: {}]
  %s2 = inlined_call_operand.vmem [shape: f32[64,32], index: 2, kind: input, shape index: {}]
  %s3 = inlined_call_operand.vmem [shape: f32[1,32], index: 3, kind: input, shape index: {}]
  %s4 = inlined_call_operand.vmem [shape: f32[32,16], index: 4, kind: input, shape index: {}]
  %s5 = inlined_call_operand.vmem [shape: f32[1,16], index: 5, kind: input, shape index: {}]
  %s6 = inlined_call_operand.vmem [shape: f32[1,16], index: 6, kind: input, shape index: {}]
  %s7 = inlined_call_operand.hbm [shape: f32[8,128], index: 7, kind: output, shape index: {}]
  %s8 = sld [smem:[#allocation0]]
  $region38: #{tpu_custom_call.1} parent=0
    _
  %s10 = ssub.s32 1, %s8
  %s11 = scalar_select 0, %s10, %s8
  $region1: #{tpu_custom_call.1} parent=0
    #allocation2 [shape = 'u8[4096]{0}', space=vmem, size = 0x1000, scoped, tag = 'output window, operand 0, single buffered']
    #allocation3 [shape = 's32[1]{0}', space=sflag, size = 0x4, scoped, tag = 'scoped memory for tpu_custom_call.1']
    %12 = vsyncpa [#allocation3], 0
    // Predicated region
    $region2: #{tpu_custom_call.1} parent=1 // pred_check
      _
    $region3: #{tpu_custom_call.1} parent=1 // pred_check_branch
      %14 = sbr.rel (0) target = $region5
    $region4: #{tpu_custom_call.1} parent=1 // pred_region
      _
    $region5: #{tpu_custom_call.1} parent=1 // pred_fallthru
      _
    // Predicated region
    $region6: #{tpu_custom_call.1} parent=1 // pred_check
      _
    $region7: #{tpu_custom_call.1} parent=1 // pred_check_branch
      %16 = sbr.rel (0) target = $region9
    $region8: #{tpu_custom_call.1} parent=1 // pred_region
      _
    $region9: #{tpu_custom_call.1} parent=1 // pred_fallthru
      _
    // Predicated region
    $region10: #{tpu_custom_call.1} parent=1 // pred_check
      _
    $region11: #{tpu_custom_call.1} parent=1 // pred_check_branch
      %18 = sbr.rel (0) target = $region13
    $region12: #{tpu_custom_call.1} parent=1 // pred_region
      _
    $region13: #{tpu_custom_call.1} parent=1 // pred_fallthru
      _
    // Predicated region
    $region14: #{tpu_custom_call.1} parent=1 // pred_check
      _
    $region15: #{tpu_custom_call.1} parent=1 // pred_check_branch
      %20 = sbr.rel (0) target = $region17
    $region16: #{tpu_custom_call.1} parent=1 // pred_region
      _
    $region17: #{tpu_custom_call.1} parent=1 // pred_fallthru
      _
    // Predicated region
    $region18: #{tpu_custom_call.1} parent=1 // pred_check
      _
    $region19: #{tpu_custom_call.1} parent=1 // pred_check_branch
      %22 = sbr.rel (0) target = $region21
    $region20: #{tpu_custom_call.1} parent=1 // pred_region
      _
    $region21: #{tpu_custom_call.1} parent=1 // pred_fallthru
      _
    // Predicated region
    $region22: #{tpu_custom_call.1} parent=1 // pred_check
      _
    $region23: #{tpu_custom_call.1} parent=1 // pred_check_branch
      %24 = sbr.rel (0) target = $region25
    $region24: #{tpu_custom_call.1} parent=1 // pred_region
      _
    $region25: #{tpu_custom_call.1} parent=1 // pred_fallthru
      _
    // Predicated region
    $region26: #{tpu_custom_call.1} parent=1 // pred_check
      _
    $region27: #{tpu_custom_call.1} parent=1 // pred_check_branch
      %26 = sbr.rel (0) target = $region29
    $region28: #{tpu_custom_call.1} parent=1 // pred_region
      _
    $region29: #{tpu_custom_call.1} parent=1 // pred_fallthru
      _
    %v27 = vld [vmem:[%s0] sm:$0xf]
    %v28 = vunpack.c.l.bf16 %v27
    %v29 = vld [vmem:[%s2] sm:$0xff]
    %v30 = vld [vmem:[%s2 + $0x8] sm:$0xff]
    %v31 = vld [vmem:[%s2 + $0x10] sm:$0xff]
    %v32 = vld [vmem:[%s2 + $0x18] sm:$0xff]
    %v33 = vld [vmem:[%s2 + $0x20] sm:$0xff]
    %v34 = vld [vmem:[%s2 + $0x28] sm:$0xff]
    %v35 = vld [vmem:[%s2 + $0x30] sm:$0xff]
    %v36 = vld [vmem:[%s2 + $0x38] sm:$0xff]
    %v37 = vld [vmem:[%s3] sm:$0x1]
    %v39 = vlaneseq
    %v40 = vshrl.u32 %v39, 7
    %v41 = vsub.s32 0, %v40
    %v42 = vrot.slane %v37, %v41
    %vm44 = vcmask 523264
    %v46 = vsel %vm44, %v28, 0
    %48 = vmatprep.subr.mxu0 0.0
    %49 = vmatpush1.msra.mxu0 %v29
    %50 = vmatprep.subr.mxu0 0.0
    %51 = vmatpush1.msra.mxu0 %v30
    %52 = vmatprep.subr.mxu0 0.0
    %53 = vmatpush1.msra.mxu0 %v31
    %54 = vmatprep.subr.mxu0 0.0
    %55 = vmatpush1.msra.mxu0 %v32
    %56 = vmatprep.subr.mxu0 0.0
    %57 = vmatpush1.msra.mxu0 %v33
    %58 = vmatprep.subr.mxu0 0.0
    %59 = vmatpush1.msra.mxu0 %v34
    %60 = vmatprep.subr.mxu0 0.0
    %61 = vmatpush1.msra.mxu0 %v35
    %62 = vmatprep.subr.mxu0 0.0
    %63 = vmatpush1.msra.mxu0 %v36
    %64 = vmatprep.subr.mxu0 0.0
    %65 = vmatpush1.msra.mxu0 0.0
    %66 = vmatprep.subr.mxu0 0.0
    %67 = vmatpush1.msra.mxu0 0.0
    %68 = vmatprep.subr.mxu0 0.0
    %69 = vmatpush1.msra.mxu0 0.0
    %70 = vmatprep.subr.mxu0 0.0
    %71 = vmatpush1.msra.mxu0 0.0
    %72 = vmatprep.subr.mxu0 0.0
    %73 = vmatpush1.msra.mxu0 0.0
    %74 = vmatprep.subr.mxu0 0.0
    %75 = vmatpush1.msra.mxu0 0.0
    %76 = vmatprep.subr.mxu0 0.0
    %77 = vmatpush1.msra.mxu0 0.0
    %78 = vmatprep.subr.mxu0 0.0
    %79 = vmatpush1.msra.mxu0 0.0
    %80 = vmatprep.subr.mxu0 0.0
    %81 = vmatpush1.msra.mxu0 0.0
    %82 = vmatprep.subr.mxu0 0.0
    %83 = vmatpush1.msra.mxu0 0.0
    %84 = vmatprep.subr.mxu0 0.0
    %85 = vmatpush1.msra.mxu0 0.0
    %86 = vmatprep.subr.mxu0 0.0
    %87 = vmatpush1.msra.mxu0 0.0
    %88 = vmatprep.subr.mxu0 0.0
    %89 = vmatpush1.msra.mxu0 0.0
    %90 = vmatprep.subr.mxu0 0.0
    %91 = vmatpush1.msra.mxu0 0.0
    %92 = vmatprep.subr.mxu0 0.0
    %93 = vmatpush1.msra.mxu0 0.0
    %94 = vmatprep.subr.mxu0 0.0
    %95 = vmatpush1.msra.mxu0 0.0
    %96 = vmatprep.subr.mxu0 0.0
    %97 = vmatpush1.msra.mxu0 0.0
    %98 = vmatprep.subr.mxu0 0.0
    %99 = vmatpush1.msra.mxu0 0.0
    %100 = vmatprep.subr.mxu0 0.0
    %101 = vmatpush1.msra.mxu0 0.0
    %102 = vmatprep.subr.mxu0 0.0
    %103 = vmatpush1.msra.mxu0 0.0
    %104 = vmatprep.subr.mxu0 0.0
    %105 = vmatpush1.msra.mxu0 0.0
    %106 = vmatprep.subr.mxu0 0.0
    %107 = vmatpush1.msra.mxu0 0.0
    %108 = vmatprep.subr.mxu0 0.0
    %109 = vmatpush1.msra.mxu0 0.0
    %110 = vmatprep.subr.mxu0 0.0
    %111 = vmatpush1.msra.mxu0 0.0
    %112 = vmatprep.mubr.f32.mxu0 0.0
    %113 = vmatmul.mubr.f32.gmra.mrb[0].mxu0 %v46
    %v114 = vpop.f32.mrb[0].mxu0
    %v115 = vadd.f32 %v42, %v114
    %v116 = vpop.f32.mrb[0].mxu0
    %117 = vdwg.mxu0
    %v118 = vmax.f32 %v115, 0.0
    %v119 = vld [vmem:[%s4] sm:$0xff]
    %v120 = vld [vmem:[%s4 + $0x8] sm:$0xff]
    %v121 = vld [vmem:[%s4 + $0x10] sm:$0xff]
    %v122 = vld [vmem:[%s4 + $0x18] sm:$0xff]
    %v123 = vld [vmem:[%s5] sm:$0x1]
    %v125 = vlaneseq
    %v126 = vshrl.u32 %v125, 7
    %v127 = vsub.s32 0, %v126
    %v128 = vrot.slane %v123, %v127
    %vm130 = vcmask 261120
    %v132 = vsel %vm130, %v118, 0
    %134 = vmatprep.subr.mxu0 0.0
    %135 = vmatpush1.msra.mxu0 %v119
    %136 = vmatprep.subr.mxu0 0.0
    %137 = vmatpush1.msra.mxu0 %v120
    %138 = vmatprep.subr.mxu0 0.0
    %139 = vmatpush1.msra.mxu0 %v121
    %140 = vmatprep.subr.mxu0 0.0
    %141 = vmatpush1.msra.mxu0 %v122
    %142 = vmatprep.subr.mxu0 0.0
    %143 = vmatpush1.msra.mxu0 0.0
    %144 = vmatprep.subr.mxu0 0.0
    %145 = vmatpush1.msra.mxu0 0.0
    %146 = vmatprep.subr.mxu0 0.0
    %147 = vmatpush1.msra.mxu0 0.0
    %148 = vmatprep.subr.mxu0 0.0
    %149 = vmatpush1.msra.mxu0 0.0
    %150 = vmatprep.subr.mxu0 0.0
    %151 = vmatpush1.msra.mxu0 0.0
    %152 = vmatprep.subr.mxu0 0.0
    %153 = vmatpush1.msra.mxu0 0.0
    %154 = vmatprep.subr.mxu0 0.0
    %155 = vmatpush1.msra.mxu0 0.0
    %156 = vmatprep.subr.mxu0 0.0
    %157 = vmatpush1.msra.mxu0 0.0
    %158 = vmatprep.subr.mxu0 0.0
    %159 = vmatpush1.msra.mxu0 0.0
    %160 = vmatprep.subr.mxu0 0.0
    %161 = vmatpush1.msra.mxu0 0.0
    %162 = vmatprep.subr.mxu0 0.0
    %163 = vmatpush1.msra.mxu0 0.0
    %164 = vmatprep.subr.mxu0 0.0
    %165 = vmatpush1.msra.mxu0 0.0
    %166 = vmatprep.subr.mxu0 0.0
    %167 = vmatpush1.msra.mxu0 0.0
    %168 = vmatprep.subr.mxu0 0.0
    %169 = vmatpush1.msra.mxu0 0.0
    %170 = vmatprep.subr.mxu0 0.0
    %171 = vmatpush1.msra.mxu0 0.0
    %172 = vmatprep.subr.mxu0 0.0
    %173 = vmatpush1.msra.mxu0 0.0
    %174 = vmatprep.subr.mxu0 0.0
    %175 = vmatpush1.msra.mxu0 0.0
    %176 = vmatprep.subr.mxu0 0.0
    %177 = vmatpush1.msra.mxu0 0.0
    %178 = vmatprep.subr.mxu0 0.0
    %179 = vmatpush1.msra.mxu0 0.0
    %180 = vmatprep.subr.mxu0 0.0
    %181 = vmatpush1.msra.mxu0 0.0
    %182 = vmatprep.subr.mxu0 0.0
    %183 = vmatpush1.msra.mxu0 0.0
    %184 = vmatprep.subr.mxu0 0.0
    %185 = vmatpush1.msra.mxu0 0.0
    %186 = vmatprep.subr.mxu0 0.0
    %187 = vmatpush1.msra.mxu0 0.0
    %188 = vmatprep.subr.mxu0 0.0
    %189 = vmatpush1.msra.mxu0 0.0
    %190 = vmatprep.subr.mxu0 0.0
    %191 = vmatpush1.msra.mxu0 0.0
    %192 = vmatprep.subr.mxu0 0.0
    %193 = vmatpush1.msra.mxu0 0.0
    %194 = vmatprep.subr.mxu0 0.0
    %195 = vmatpush1.msra.mxu0 0.0
    %196 = vmatprep.subr.mxu0 0.0
    %197 = vmatpush1.msra.mxu0 0.0
    %198 = vmatprep.mubr.f32.mxu0 0.0
    %199 = vmatmul.mubr.f32.gmra.mrb[0].mxu0 %v132
    %v200 = vpop.f32.mrb[0].mxu0
    %v201 = vadd.f32 %v128, %v200
    %v202 = vpop.f32.mrb[0].mxu0
    %203 = vdwg.mxu0
    %v204 = vld [vmem:[%s6] sm:$0x1]
    %v206 = vlaneseq
    %v207 = vshrl.u32 %v206, 7
    %v208 = vsub.s32 0, %v207
    %v209 = vrot.slane %v204, %v208
    %v211 = vmul.f32 %v201, %v209
    %vm212 = vcmask 130048
    %v213 = vsel %vm212, %v211, 0.0
    %214 = vadd.xlane.f32.xlu0 %v213
    %v215 = vpop.xlane.xlu0 %214
    %v216 = vld [vmem:[%s1] sm:$0xff]
    %v217 = vadd.f32 %v215, %v216
    %v218 = vxor.u32 %v217, 2147483648
    %v219 = vmul.f32 %v218, 1.442695
    %v220 = vpow.pop %v219
    %v221 = vadd.f32 %v220, 1.0
    %v222 = vrcp.pop %v221
    %v223 = vmul.f32 1.0, %v222
    %224 = vst [vmem:[#allocation2] sm:$0xff] %v223
    // Predicated region
    $region30: #{tpu_custom_call.1} parent=1 // pred_check
      _
    $region31: #{tpu_custom_call.1} parent=1 // pred_check_branch
      %226 = sbr.rel (0) target = $region33
    $region32: #{tpu_custom_call.1} parent=1 // pred_region
      %s228 = ssub.s32 128, 128
      %229 = vsyncadd [#allocation3], %s228
      %s231 = sshll.u32 [#allocation2], 4
      %s232 = int_to_ptr.vmem [resolvable:$true] %s231
      %234 = dma.vmem_to_hbm [thread:$0]  %s232, 128, %s7, [#allocation3]
    $region33: #{tpu_custom_call.1} parent=1 // pred_fallthru
      _
    // Predicated region
    $region34: #{tpu_custom_call.1} parent=1 // pred_check
      _
    $region35: #{tpu_custom_call.1} parent=1 // pred_check_branch
      %236 = sbr.rel (0) target = $region37
    $region36: #{tpu_custom_call.1} parent=1 // pred_region
      %237 = dma.done [#allocation3], 128
    $region37: #{tpu_custom_call.1} parent=1 // pred_fallthru
      _
    %238 = vsyncpa [#allocation3], 1

</llo_original>
